<compile_context>
chip_gen: v7x
topology: tpu7x:2x2x1
jax: 0.10.0
libtpu: 0.0.40
codegen_flags: <defaults>
</compile_context>

<pallas_src>
import jax
import jax.numpy as jnp
from jax.experimental import pallas as pl
from jax.experimental.pallas import tpu as pltpu


def _round_up(x, m):
    return ((x + m - 1) // m) * m


# ----------------------------------------------------------------------------
# Pallas kernel: one fused GEMM + bias per M-tile.
# ----------------------------------------------------------------------------
def fused_downsample_kernel(x_ref, w_ref, b_ref, o_ref):
    """x_ref : (TM, Kp)  bf16  im2col'd HR taps ++ low-res channels (ReLU pre-applied)
       w_ref : (Kp, Cout) bf16 stacked BN-folded weights (3x3 branch ++ 1x1 branch)
       b_ref : (1, Cout)  f32  pre-summed BN-folded biases of both branches
       o_ref : (TM, Cout) f32  output rows (NHWC-flattened M), no transpose needed
    """
    acc = jnp.dot(x_ref[...], w_ref[...], preferred_element_type=jnp.float32)
    o_ref[...] = (acc + b_ref[...]).astype(o_ref.dtype)


# ----------------------------------------------------------------------------
# Tile-size selection against an explicit VMEM budget (conservative enough for
# v5e's default scoped VMEM once raised, and for v7x's 64 MiB/TC physical).
# ----------------------------------------------------------------------------
def _pick_tile_m(M, K_pad, Cout, budget_bytes=20 * 1024 * 1024):
    best = 128
    for tm in (2048, 1024, 512, 256, 128):
        need = (2 * tm * K_pad * 2            # double-buffered bf16 x tiles
                + 2 * tm * Cout * 4           # double-buffered f32 out tiles
                + 2 * K_pad * Cout * 2        # resident weights (count 2 bufs)
                + tm * max(Cout, 128) * 4)    # f32 accumulator headroom
        if need <= budget_bytes:
            best = tm
            break
    tm = min(best, _round_up(M, 128))         # don't over-pad tiny M
    # Give v7x's two TensorCores at least two parallel grid steps when there
    # is enough work for it to matter.
    if M > 1024 and _round_up(M, tm) // tm < 2:
        tm = max(128, _round_up((M + 1) // 2, 128))
    return tm


# ----------------------------------------------------------------------------
# Wrapper
# ----------------------------------------------------------------------------
@jax.jit
def downsample_module(hr_nhwc, lr_nhwc, w_ds, b_ds, w_id, b_id):
    """hr_nhwc: (N, H, W, C_hr), lr_nhwc: (N, H//2, W//2, C_in)
       w_ds: (3, 3, C_hr, C_out) BN-folded; b_ds: (C_out,)
       w_id: (C_in, C_out)       BN-folded; b_id: (C_out,)
       -> (N, H//2, W//2, C_out) float32."""
    N, H, W, Chr = hr_nhwc.shape
    _, Ho, Wo, Cin = lr_nhwc.shape
    Cout = w_ds.shape[-1]
    assert H % 2 == 0 and W % 2 == 0, "DownsampleModule requires even H/W"
    assert Ho == H // 2 and Wo == W // 2

    M = N * Ho * Wo
    KH = 9 * Chr
    K = KH + Cin
    K_pad = _round_up(K, 16)                  # bf16 sublane packing

    # ---- wrapper prologue (single fused XLA pass; layout plumbing only) ----
    # ReLU in f32 before the bf16 downcast and before tap expansion; the
    # identity branch gets no activation.  Zero halo padding is ReLU-invariant.
    hr_act = jnp.maximum(hr_nhwc, 0.0).astype(jnp.bfloat16)
    hr_pad = jnp.pad(hr_act, ((0, 0), (1, 1), (1, 1), (0, 0)))
    taps = [hr_pad[:, kh:kh + 2 * Ho:2, kw:kw + 2 * Wo:2, :]
            for kh in range(3) for kw in range(3)]
    x = jnp.concatenate(taps + [lr_nhwc.astype(jnp.bfloat16)], axis=-1)
    x = x.reshape(M, K)                                          # (M, K) bf16

    w = jnp.concatenate([w_ds.reshape(KH, Cout), w_id], axis=0)  # (K, Cout)
    w = w.astype(jnp.bfloat16)
    bias = (b_ds + b_id).reshape(1, Cout).astype(jnp.float32)

    # ---- M tiling: lane-dense, as large as the VMEM budget allows ----------
    TM = _pick_tile_m(M, K_pad, Cout)
    M_pad = _round_up(M, TM)
    x = jnp.pad(x, ((0, M_pad - M), (0, K_pad - K)))   # zero rows -> bias only, sliced off
    w = jnp.pad(w, ((0, K_pad - K), (0, 0)))           # zero rows contribute nothing

    grid = (M_pad // TM,)
    out = pl.pallas_call(
        fused_downsample_kernel,
        out_shape=jax.ShapeDtypeStruct((M_pad, Cout), jnp.float32),
        grid_spec=pltpu.PrefetchScalarGridSpec(
            num_scalar_prefetch=0,
            grid=grid,
            in_specs=[
                pl.BlockSpec((TM, K_pad), lambda m: (m, 0)),
                pl.BlockSpec((K_pad, Cout), lambda m: (0, 0)),
                pl.BlockSpec((1, Cout), lambda m: (0, 0)),
            ],
            out_specs=pl.BlockSpec((TM, Cout), lambda m: (m, 0)),
        ),
        compiler_params=pltpu.CompilerParams(
            dimension_semantics=("parallel",),
            vmem_limit_bytes=48 * 1024 * 1024),
    )(x, w, bias)

    return out[:M].reshape(N, Ho, Wo, Cout)


def fold_bn(w, gamma, beta, mean, var, eps=1e-5):
    """Fold inference-mode BatchNorm into conv weights (out-channel = last dim) + bias."""
    scale = gamma / jnp.sqrt(var + eps)
    return w * scale, beta - mean * scale


# ----------------------------------------------------------------------------
# Pure-JAX reference (for correctness check)
# ----------------------------------------------------------------------------
def reference(hr_nhwc, lr_nhwc, w_ds, b_ds, w_id, b_id, cast=lambda a: a):
    x = cast(jnp.maximum(hr_nhwc, 0.0)).astype(jnp.float32)
    y = jax.lax.conv_general_dilated(
        x, cast(w_ds).astype(jnp.float32), window_strides=(2, 2),
        padding=((1, 1), (1, 1)),
        dimension_numbers=("NHWC", "HWIO", "NHWC")) + b_ds
    idn = jnp.einsum("nhwc,cd->nhwd",
                     cast(lr_nhwc).astype(jnp.float32),
                     cast(w_id).astype(jnp.float32)) + b_id
    return y + idn


def _bf16_round(a):
    return a.astype(jnp.bfloat16).astype(jnp.float32)


# ----------------------------------------------------------------------------
# Main
# ----------------------------------------------------------------------------
if __name__ == "__main__":
    key = jax.random.PRNGKey(0)
    N, H, W = 2, 16, 16
    C_HR, C_IN, C_OUT = 4, 8, 8          # high_res_in_channels, in_channels, out_channels
    Ho, Wo = H // 2, W // 2

    k1, k2, k3, k4 = jax.random.split(key, 4)
    # inputs (PyTorch module is NCHW; we build the NHWC layout directly)
    high_res = jax.random.normal(k1, (N, H, W, C_HR), jnp.float32)
    low_res = jax.random.normal(k2, (N, Ho, Wo, C_IN), jnp.float32)

    # conv weights (PyTorch OIHW -> HWIO), deterministic init
    w_ds_oihw = jax.random.normal(k3, (C_OUT, C_HR, 3, 3), jnp.float32) * 0.1
    w_id_oihw = jax.random.normal(k4, (C_OUT, C_IN, 1, 1), jnp.float32) * 0.1
    w_ds_hwio = jnp.transpose(w_ds_oihw, (2, 3, 1, 0))           # (3,3,C_hr,C_out)
    w_id_io = jnp.transpose(w_id_oihw, (2, 3, 1, 0))[0, 0]       # (C_in, C_out)

    # fresh-init BatchNorm params (gamma=1, beta=0, running_mean=0, running_var=1)
    gamma = jnp.ones((C_OUT,), jnp.float32)
    beta = jnp.zeros((C_OUT,), jnp.float32)
    mean = jnp.zeros((C_OUT,), jnp.float32)
    var = jnp.ones((C_OUT,), jnp.float32)

    w_ds_f, b_ds_f = fold_bn(w_ds_hwio, gamma, beta, mean, var)
    w_id_f, b_id_f = fold_bn(w_id_io, gamma, beta, mean, var)

    out = downsample_module(high_res, low_res, w_ds_f, b_ds_f, w_id_f, b_id_f)
    out = jax.block_until_ready(out)
    assert out.shape == (N, Ho, Wo, C_OUT), out.shape

    # Tight check against a reference using the same bf16-rounded operands
    # (kernel accumulates in f32, so only summation order differs).
    ref_q = reference(high_res, low_res, w_ds_f, b_ds_f, w_id_f, b_id_f,
                      cast=_bf16_round)
    err_q = float(jnp.max(jnp.abs(out - ref_q)))
    assert jnp.allclose(out, ref_q, atol=2e-3, rtol=2e-3), err_q

    # Loose semantic sanity check against the pure-f32 module semantics
    # (bf16 operand rounding is the only difference).
    ref_f = reference(high_res, low_res, w_ds_f, b_ds_f, w_id_f, b_id_f)
    err_f = float(jnp.max(jnp.abs(out - ref_f)))
    assert jnp.allclose(out, ref_f, atol=1e-1, rtol=1e-1), err_f

    print("KERNEL_OK")
</pallas_src>

<mosaic_0001>
module attributes {stable_mosaic.version = 11 : i64} {
  func.func @fused_downsample_kernel(%arg0: i32, %arg1: memref<128x48xbf16, #tpu.memory_space<vmem>>, %arg2: memref<48x8xbf16, #tpu.memory_space<vmem>>, %arg3: memref<1x8xf32, #tpu.memory_space<vmem>>, %arg4: memref<128x8xf32, #tpu.memory_space<vmem>>) attributes {dimension_semantics = [#tpu.dimension_semantics<parallel>], iteration_bounds = array<i64: 1>, scalar_prefetch = 0 : i64, scratch_operands = 0 : i64, tpu.core_type = #tpu.core_type<tc>, window_params = [{transform_indices = @transform_0, window_bounds = array<i64: 128, 48>}, {pipeline_mode = #tpu.pipeline_mode<synchronous>, transform_indices = @transform_1, window_bounds = array<i64: 48, 8>}, {pipeline_mode = #tpu.pipeline_mode<synchronous>, transform_indices = @transform_2, window_bounds = array<i64: 1, 8>}, {transform_indices = @transform_3, window_bounds = array<i64: 128, 8>}]} {
    %c0 = arith.constant 0 : index
    %c0_0 = arith.constant 0 : index
    %0 = vector.load %arg1[%c0, %c0_0] : memref<128x48xbf16, #tpu.memory_space<vmem>>, vector<128x48xbf16>
    %c0_1 = arith.constant 0 : index
    %c0_2 = arith.constant 0 : index
    %1 = vector.load %arg2[%c0_1, %c0_2] : memref<48x8xbf16, #tpu.memory_space<vmem>>, vector<48x8xbf16>
    %cst = arith.constant dense<0.000000e+00> : vector<128x8xf32>
    %2 = tpu.matmul %0, %1, %cst {dimension_numbers = #tpu.dot_dimension_numbers<[1], [0], [0], [1], [0, 0, 1, 1], [], []>} : vector<128x48xbf16>, vector<48x8xbf16>, vector<128x8xf32> -> vector<128x8xf32>
    %c0_3 = arith.constant 0 : index
    %c0_4 = arith.constant 0 : index
    %3 = vector.load %arg3[%c0_3, %c0_4] : memref<1x8xf32, #tpu.memory_space<vmem>>, vector<1x8xf32>
    %4 = vector.broadcast %3 : vector<1x8xf32> to vector<128x8xf32>
    %5 = arith.addf %2, %4 : vector<128x8xf32>
    %c0_5 = arith.constant 0 : index
    %c0_6 = arith.constant 0 : index
    %6 = vector.load %arg4[%c0_5, %c0_6] : memref<128x8xf32, #tpu.memory_space<vmem>>, vector<128x8xf32>
    tpu.vector_store %arg4[%c0_5, %c0_6], %5 {strides = array<i32>} : memref<128x8xf32, #tpu.memory_space<vmem>>, vector<128x8xf32>,
    return
  }
  func.func @transform_0(%arg0: i32) -> (i32, i32) {
    %c0_i32 = arith.constant 0 : i32
    %c0_i32_0 = arith.constant 0 : i32
    return %arg0, %c0_i32 : i32, i32
  }
  func.func @transform_1(%arg0: i32) -> (i32, i32) {
    %c0_i32 = arith.constant 0 : i32
    %c0_i32_0 = arith.constant 0 : i32
    %c0_i32_1 = arith.constant 0 : i32
    return %c0_i32, %c0_i32_0 : i32, i32
  }
  func.func @transform_2(%arg0: i32) -> (i32, i32) {
    %c0_i32 = arith.constant 0 : i32
    %c0_i32_0 = arith.constant 0 : i32
    %c0_i32_1 = arith.constant 0 : i32
    return %c0_i32, %c0_i32_0 : i32, i32
  }
  func.func @transform_3(%arg0: i32) -> (i32, i32) {
    %c0_i32 = arith.constant 0 : i32
    %c0_i32_0 = arith.constant 0 : i32
    return %arg0, %c0_i32 : i32, i32
  }
}

</mosaic_0001>

<llo_original>
// kernel: downsample_module.1
$region0: #{downsample_module.1}
  #allocation0 [shape = 'u32[]', space=smem, size = 0x4, offset = 0x4, fixed_abs, tag = 'smem constant byte address 0x4 - core index']
  #allocation1 [shape = 'u32[144,128]{1,0:T(1,128)}', space=vmem, size = 0x12000, scoped, tag = 'internal scratch']
  %s0 = inlined_call_operand.vmem [shape: bf16[128,48], index: 0, kind: input, shape index: {}]
  %s1 = inlined_call_operand.vmem [shape: bf16[48,8], index: 1, kind: input, shape index: {}]
  %s2 = inlined_call_operand.vmem [shape: f32[1,8], index: 2, kind: input, shape index: {}]
  %s3 = inlined_call_operand.hbm [shape: f32[128,8], index: 3, kind: output, shape index: {}]
  %s4 = sld [smem:[#allocation0]]
  $region22: #{downsample_module.1} parent=0
    _
  %s6 = ssub.s32 1, %s4
  %s7 = scalar_select 0, %s6, %s4
  $region1: #{downsample_module.1} parent=0
    #allocation2 [shape = 'u8[65536]{0}', space=vmem, size = 0x10000, scoped, tag = 'output window, operand 0, single buffered']
    #allocation3 [shape = 's32[1]{0}', space=sflag, size = 0x4, scoped, tag = 'scoped memory for downsample_module.1']
    %8 = vsyncpa [#allocation3], 0
    // Predicated region
    $region2: #{downsample_module.1} parent=1 // pred_check
      _
    $region3: #{downsample_module.1} parent=1 // pred_check_branch
      %10 = sbr.rel (0) target = $region5
    $region4: #{downsample_module.1} parent=1 // pred_region
      _
    $region5: #{downsample_module.1} parent=1 // pred_fallthru
      _
    // Predicated region
    $region6: #{downsample_module.1} parent=1 // pred_check
      _
    $region7: #{downsample_module.1} parent=1 // pred_check_branch
      %12 = sbr.rel (0) target = $region9
    $region8: #{downsample_module.1} parent=1 // pred_region
      _
    $region9: #{downsample_module.1} parent=1 // pred_fallthru
      _
    // Predicated region
    $region10: #{downsample_module.1} parent=1 // pred_check
      _
    $region11: #{downsample_module.1} parent=1 // pred_check_branch
      %14 = sbr.rel (0) target = $region13
    $region12: #{downsample_module.1} parent=1 // pred_region
      _
    $region13: #{downsample_module.1} parent=1 // pred_fallthru
      _
    %v16 = vld [vmem:[%s0] sm:$0xf]
    %v17 = vld [vmem:[%s0 + $0x4] sm:$0xf]
    %v18 = vld [vmem:[%s0 + $0x8] sm:$0xf]
    %v19 = vld [vmem:[%s0 + $0xc] sm:$0xf]
    %v20 = vld [vmem:[%s0 + $0x10] sm:$0xf]
    %v21 = vld [vmem:[%s0 + $0x14] sm:$0xf]
    %v22 = vld [vmem:[%s0 + $0x18] sm:$0xf]
    %v23 = vld [vmem:[%s0 + $0x1c] sm:$0xf]
    %v24 = vld [vmem:[%s0 + $0x20] sm:$0xf]
    %v25 = vld [vmem:[%s0 + $0x24] sm:$0xf]
    %v26 = vld [vmem:[%s0 + $0x28] sm:$0xf]
    %v27 = vld [vmem:[%s0 + $0x2c] sm:$0xf]
    %v28 = vld [vmem:[%s0 + $0x30] sm:$0xf]
    %v29 = vld [vmem:[%s0 + $0x34] sm:$0xf]
    %v30 = vld [vmem:[%s0 + $0x38] sm:$0xf]
    %v31 = vld [vmem:[%s0 + $0x3c] sm:$0xf]
    %v32 = vld [vmem:[%s1] sm:$0xf]
    %v33 = vld [vmem:[%s1 + $0x4] sm:$0xf]
    %v34 = vld [vmem:[%s1 + $0x8] sm:$0xf]
    %v35 = vld [vmem:[%s1 + $0xc] sm:$0xf]
    %v36 = vld [vmem:[%s1 + $0x10] sm:$0xf]
    %v37 = vld [vmem:[%s1 + $0x14] sm:$0xf]
    %v38 = vld [vmem:[%s2] sm:$0x1]
    %v40 = vlaneseq
    %v41 = vshrl.u32 %v40, 7
    %v42 = vsub.s32 0, %v41
    %v43 = vrot.slane %v38, %v42
    %v61 = vunpack.c.l.b16 %v16
    %v62 = vunpack.c.l.b16 %v17
    %v63 = vunpack.c.l.b16 %v18
    %v64 = vunpack.c.l.b16 %v19
    %v65 = vunpack.c.l.b16 %v20
    %v66 = vunpack.c.l.b16 %v21
    %v67 = vunpack.c.l.b16 %v22
    %v68 = vunpack.c.l.b16 %v23
    %v69 = vunpack.c.l.b16 %v24
    %v70 = vunpack.c.l.b16 %v25
    %v71 = vunpack.c.l.b16 %v26
    %v72 = vunpack.c.l.b16 %v27
    %v73 = vunpack.c.l.b16 %v28
    %v74 = vunpack.c.l.b16 %v29
    %v75 = vunpack.c.l.b16 %v30
    %v76 = vunpack.c.l.b16 %v31
    %v77 = vpack.c.b16 %v62, %v61
    %v78 = vpack.c.b16 %v64, %v63
    %v79 = vpack.c.b16 %v66, %v65
    %v80 = vpack.c.b16 %v68, %v67
    %v81 = vpack.c.b16 %v70, %v69
    %v82 = vpack.c.b16 %v72, %v71
    %v83 = vpack.c.b16 %v74, %v73
    %v84 = vpack.c.b16 %v76, %v75
    %v91 = vunpack.c.l.b16 %v32
    %v92 = vunpack.c.l.b16 %v33
    %v93 = vunpack.c.l.b16 %v34
    %v94 = vunpack.c.l.b16 %v35
    %v95 = vunpack.c.l.b16 %v36
    %v96 = vunpack.c.l.b16 %v37
    %v97 = vpack.c.b16 %v92, %v91
    %v98 = vpack.c.b16 %v94, %v93
    %v99 = vpack.c.b16 %v96, %v95
    %vm103 = vcmask 392192
    %v105 = vsel %vm103, %v77, 0
    %v108 = vsel %vm103, %v78, 0
    %v111 = vsel %vm103, %v79, 0
    %v114 = vsel %vm103, %v80, 0
    %v117 = vsel %vm103, %v81, 0
    %v120 = vsel %vm103, %v82, 0
    %v123 = vsel %vm103, %v83, 0
    %v126 = vsel %vm103, %v84, 0
    %128 = vmatprep.subr.bf16.mxu0 0
    %129 = vmatpush1.bf16.msra.mxu0 %v97
    %130 = vmatprep.subr.bf16.mxu0 0
    %131 = vmatpush1.bf16.msra.mxu0 %v98
    %132 = vmatprep.subr.bf16.mxu0 0
    %133 = vmatpush1.bf16.msra.mxu0 %v99
    %134 = vmatprep.subr.bf16.mxu0 0
    %135 = vmatpush1.bf16.msra.mxu0 0
    %136 = vmatprep.subr.bf16.mxu0 0
    %137 = vmatpush1.bf16.msra.mxu0 0
    %138 = vmatprep.subr.bf16.mxu0 0
    %139 = vmatpush1.bf16.msra.mxu0 0
    %140 = vmatprep.subr.bf16.mxu0 0
    %141 = vmatpush1.bf16.msra.mxu0 0
    %142 = vmatprep.subr.bf16.mxu0 0
    %143 = vmatpush1.bf16.msra.mxu0 0
    %144 = vmatprep.subr.bf16.mxu0 0
    %145 = vmatpush1.bf16.msra.mxu0 0
    %146 = vmatprep.subr.bf16.mxu0 0
    %147 = vmatpush1.bf16.msra.mxu0 0
    %148 = vmatprep.subr.bf16.mxu0 0
    %149 = vmatpush1.bf16.msra.mxu0 0
    %150 = vmatprep.subr.bf16.mxu0 0
    %151 = vmatpush1.bf16.msra.mxu0 0
    %152 = vmatprep.subr.bf16.mxu0 0
    %153 = vmatpush1.bf16.msra.mxu0 0
    %154 = vmatprep.subr.bf16.mxu0 0
    %155 = vmatpush1.bf16.msra.mxu0 0
    %156 = vmatprep.subr.bf16.mxu0 0
    %157 = vmatpush1.bf16.msra.mxu0 0
    %158 = vmatprep.subr.bf16.mxu0 0
    %159 = vmatpush1.bf16.msra.mxu0 0
    %160 = vmatprep.mubr.bf16.mxu0 0
    %161 = vmatmul.mubr.bf16.gmra.mrb[0].mxu0 %v105
    %v162 = vpop.f32.mrb[0].mxu0
    %v163 = vadd.f32 %v43, %v162
    %v164 = vpop.f32.mrb[0].mxu0
    %v165 = vpop.f32.mrb[0].mxu0
    %v166 = vadd.f32 %v43, %v165
    %v167 = vpop.f32.mrb[0].mxu0
    %168 = vmatprep.mubr.bf16.mxu0 0
    %169 = vmatmul.mubr.bf16.gmra.mrb[0].mxu0 %v108
    %v170 = vpop.f32.mrb[0].mxu0
    %v171 = vadd.f32 %v43, %v170
    %v172 = vpop.f32.mrb[0].mxu0
    %v173 = vpop.f32.mrb[0].mxu0
    %v174 = vadd.f32 %v43, %v173
    %v175 = vpop.f32.mrb[0].mxu0
    %176 = vmatprep.mubr.bf16.mxu0 0
    %177 = vmatmul.mubr.bf16.gmra.mrb[0].mxu0 %v111
    %v178 = vpop.f32.mrb[0].mxu0
    %v179 = vadd.f32 %v43, %v178
    %v180 = vpop.f32.mrb[0].mxu0
    %v181 = vpop.f32.mrb[0].mxu0
    %v182 = vadd.f32 %v43, %v181
    %v183 = vpop.f32.mrb[0].mxu0
    %184 = vmatprep.mubr.bf16.mxu0 0
    %185 = vmatmul.mubr.bf16.gmra.mrb[0].mxu0 %v114
    %v186 = vpop.f32.mrb[0].mxu0
    %v187 = vadd.f32 %v43, %v186
    %v188 = vpop.f32.mrb[0].mxu0
    %v189 = vpop.f32.mrb[0].mxu0
    %v190 = vadd.f32 %v43, %v189
    %v191 = vpop.f32.mrb[0].mxu0
    %192 = vmatprep.mubr.bf16.mxu0 0
    %193 = vmatmul.mubr.bf16.gmra.mrb[0].mxu0 %v117
    %v194 = vpop.f32.mrb[0].mxu0
    %v195 = vadd.f32 %v43, %v194
    %v196 = vpop.f32.mrb[0].mxu0
    %v197 = vpop.f32.mrb[0].mxu0
    %v198 = vadd.f32 %v43, %v197
    %v199 = vpop.f32.mrb[0].mxu0
    %200 = vmatprep.mubr.bf16.mxu0 0
    %201 = vmatmul.mubr.bf16.gmra.mrb[0].mxu0 %v120
    %v202 = vpop.f32.mrb[0].mxu0
    %v203 = vadd.f32 %v43, %v202
    %v204 = vpop.f32.mrb[0].mxu0
    %v205 = vpop.f32.mrb[0].mxu0
    %v206 = vadd.f32 %v43, %v205
    %v207 = vpop.f32.mrb[0].mxu0
    %208 = vmatprep.mubr.bf16.mxu0 0
    %209 = vmatmul.mubr.bf16.gmra.mrb[0].mxu0 %v123
    %v210 = vpop.f32.mrb[0].mxu0
    %v211 = vadd.f32 %v43, %v210
    %v212 = vpop.f32.mrb[0].mxu0
    %v213 = vpop.f32.mrb[0].mxu0
    %v214 = vadd.f32 %v43, %v213
    %v215 = vpop.f32.mrb[0].mxu0
    %216 = vmatprep.mubr.bf16.mxu0 0
    %217 = vmatmul.mubr.bf16.gmra.mrb[0].mxu0 %v126
    %v218 = vpop.f32.mrb[0].mxu0
    %v219 = vadd.f32 %v43, %v218
    %v220 = vpop.f32.mrb[0].mxu0
    %v221 = vpop.f32.mrb[0].mxu0
    %v222 = vadd.f32 %v43, %v221
    %v223 = vpop.f32.mrb[0].mxu0
    %224 = vdwg.mxu0
    %vm225 = vcmask 64512
    %226 = vst.msk [vmem:[#allocation2] sm:$0xff] %vm225, %v163
    %227 = vst.msk [vmem:[#allocation2 + $0x8] sm:$0xff] %vm225, %v166
    %228 = vst.msk [vmem:[#allocation2 + $0x10] sm:$0xff] %vm225, %v171
    %229 = vst.msk [vmem:[#allocation2 + $0x18] sm:$0xff] %vm225, %v174
    %230 = vst.msk [vmem:[#allocation2 + $0x20] sm:$0xff] %vm225, %v179
    %231 = vst.msk [vmem:[#allocation2 + $0x28] sm:$0xff] %vm225, %v182
    %232 = vst.msk [vmem:[#allocation2 + $0x30] sm:$0xff] %vm225, %v187
    %233 = vst.msk [vmem:[#allocation2 + $0x38] sm:$0xff] %vm225, %v190
    %234 = vst.msk [vmem:[#allocation2 + $0x40] sm:$0xff] %vm225, %v195
    %235 = vst.msk [vmem:[#allocation2 + $0x48] sm:$0xff] %vm225, %v198
    %236 = vst.msk [vmem:[#allocation2 + $0x50] sm:$0xff] %vm225, %v203
    %237 = vst.msk [vmem:[#allocation2 + $0x58] sm:$0xff] %vm225, %v206
    %238 = vst.msk [vmem:[#allocation2 + $0x60] sm:$0xff] %vm225, %v211
    %239 = vst.msk [vmem:[#allocation2 + $0x68] sm:$0xff] %vm225, %v214
    %240 = vst.msk [vmem:[#allocation2 + $0x70] sm:$0xff] %vm225, %v219
    %241 = vst.msk [vmem:[#allocation2 + $0x78] sm:$0xff] %vm225, %v222
    // Predicated region
    $region14: #{downsample_module.1} parent=1 // pred_check
      _
    $region15: #{downsample_module.1} parent=1 // pred_check_branch
      %243 = sbr.rel (0) target = $region17
    $region16: #{downsample_module.1} parent=1 // pred_region
      %s245 = ssub.s32 2048, 2048
      %246 = vsyncadd [#allocation3], %s245
      %s247 = sshll.u32 [#allocation2], 4
      %s248 = int_to_ptr.vmem [resolvable:$true] %s247
      %253 = dma.vmem_to_hbm [thread:$0]  %s248, 2048, %s3, [#allocation3], 128, 128, 8
    $region17: #{downsample_module.1} parent=1 // pred_fallthru
      _
    // Predicated region
    $region18: #{downsample_module.1} parent=1 // pred_check
      _
    $region19: #{downsample_module.1} parent=1 // pred_check_branch
      %255 = sbr.rel (0) target = $region21
    $region20: #{downsample_module.1} parent=1 // pred_region
      %256 = dma.done [#allocation3], 2048
    $region21: #{downsample_module.1} parent=1 // pred_fallthru
      _
    %257 = vsyncpa [#allocation3], 1

</llo_original>
